<compile_context>
chip_gen: v5e
topology: v5e:2x2
jax: 0.10.0
libtpu: 0.0.40
codegen_flags: <defaults>
</compile_context>

<pallas_src>
import functools

import jax
import jax.numpy as jnp
from jax import lax
from jax.experimental import pallas as pl
from jax.experimental.pallas import tpu as pltpu


def _round_up(x: int, m: int) -> int:
    return ((x + m - 1) // m) * m


def _recon_loss_kernel(img_o_ref, txt_o_ref, img_n_ref, txt_n_ref,
                       row_ref, col_ref):
    # (cos_new - cos_orig) for one (TM, TN) tile of the score matrix:
    # two half-K MXU contractions (dim 1 of both operands contracted, so no
    # transposed operand is ever materialized), f32 accumulation.
    j = pl.program_id(1)  # inner ("arbitrary") column-tile axis
    dn = (((1,), (1,)), ((), ()))
    cos_n = lax.dot_general(img_n_ref[...], txt_n_ref[...], dn,
                            preferred_element_type=jnp.float32)
    cos_o = lax.dot_general(img_o_ref[...], txt_o_ref[...], dn,
                            preferred_element_type=jnp.float32)
    diff = cos_n - cos_o                                          # (TM, TN) f32
    sq = diff * diff

    # Per-tile column sums (lane-dense).  Every (i, j) grid step owns a distinct
    # output block, written exactly once -> parallel-safe along the row axis.
    col_ref[...] = jnp.sum(sq, axis=0, keepdims=True)[None]       # (1, 1, TN)

    # Row sums accumulate across the inner j loop; the (TM, 1) output block is
    # resident in VMEM for the whole inner loop (block index depends on i only).
    row_part = jnp.sum(sq, axis=1, keepdims=True)                 # (TM, 1)

    @pl.when(j == 0)
    def _():
        row_ref[...] = row_part

    @pl.when(j > 0)
    def _():
        row_ref[...] += row_part


@functools.partial(jax.jit,
                   static_argnames=("tile_m", "tile_n", "compute_dtype"))
def reconstruction_loss(image_embeds_original,
                        text_embeds_original,
                        image_embeds_new,
                        text_embeds_new,
                        *, tile_m: int = 1024, tile_n: int = 512,
                        compute_dtype=jnp.bfloat16):
    n, d = image_embeds_original.shape
    assert text_embeds_original.shape == (n, d)
    assert image_embeds_new.shape == (n, d)
    assert text_embeds_new.shape == (n, d)
    assert tile_m % 16 == 0 and tile_n % 128 == 0

    itemsize = jnp.dtype(compute_dtype).itemsize

    # ---- tile selection -----------------------------------------------------
    tm = min(tile_m, _round_up(n, 16))     # bf16 packs 16 rows per sublane group
    tn = min(tile_n, _round_up(n, 128))

    # v7x has 2 TensorCores; the "parallel" row axis is what gets sharded across
    # them, so ensure at least two row tiles whenever N allows it.
    if _round_up(n, tm) == tm and n >= 32:
        tm = min(tm, _round_up((n + 1) // 2, 16))

    # Shrink tiles to a conservative VMEM budget (v7x has only 64 MiB physical;
    # keep the double-buffered working set well below that).
    def _footprint(tm_, tn_):
        tiles_in = 2 * 2 * (tm_ + tn_) * d * itemsize   # 2 arrays/side, 2x buffered
        inter = 3 * tm_ * tn_ * 4                        # f32 (TM,TN) intermediates
        outs = 2 * (tm_ + tn_) * 4
        return tiles_in + inter + outs

    budget = 36 * 1024 * 1024
    while _footprint(tm, tn) > budget:
        if tn > 128 and (tn // 2) % 128 == 0 and tn >= tm:
            tn //= 2
        elif tm > 128 and (tm // 2) % 16 == 0:
            tm //= 2
        elif tn > 128 and (tn // 2) % 128 == 0:
            tn //= 2
        else:
            break
    # TODO(synk): for very large D (k >= ~8192) an innermost "arbitrary" K grid
    # axis would bound VMEM better than shrinking tm/tn.

    nm_pad = _round_up(n, tm)
    nn_pad = _round_up(n, tn)
    n_i = nm_pad // tm
    n_j = nn_pad // tn

    # ---- operand prep: cast to compute dtype, zero-pad N only when needed ----
    # Zero rows/cols contribute exactly 0 to the row/col sums, so no masking.
    def _prep(x, rows):
        x = x.astype(compute_dtype)
        if rows != n:
            x = jnp.pad(x, ((0, rows - n), (0, 0)))
        return x

    img_o = _prep(image_embeds_original, nm_pad)
    img_n = _prep(image_embeds_new, nm_pad)
    txt_o = _prep(text_embeds_original, nn_pad)
    txt_n = _prep(text_embeds_new, nn_pad)

    # ---- advisory cost estimate: txt tiles are re-streamed n_i times ---------
    cost = pl.CostEstimate(
        flops=4 * nm_pad * nn_pad * d + 3 * nm_pad * nn_pad,
        transcendentals=0,
        bytes_accessed=(2 * nm_pad * d * itemsize          # image tiles, once per i
                        + 2 * n_i * nn_pad * d * itemsize  # text tiles, re-streamed
                        + nm_pad * 4 + n_i * nn_pad * 4))  # outputs

    vmem_limit = int(min(48 * 1024 * 1024,
                         max(32 * 1024 * 1024,
                             _footprint(tm, tn) + 8 * 1024 * 1024)))

    img_spec = pl.BlockSpec((tm, d), lambda i, j: (i, 0))   # fetched once per i
    txt_spec = pl.BlockSpec((tn, d), lambda i, j: (j, 0))   # streamed over j

    row_sums, col_partials = pl.pallas_call(
        _recon_loss_kernel,
        out_shape=(
            jax.ShapeDtypeStruct((nm_pad, 1), jnp.float32),        # row sums
            jax.ShapeDtypeStruct((n_i, 1, nn_pad), jnp.float32),   # per-row-tile col sums
        ),
        grid_spec=pltpu.PrefetchScalarGridSpec(
            num_scalar_prefetch=0,
            grid=(n_i, n_j),
            in_specs=[img_spec, txt_spec, img_spec, txt_spec],
            out_specs=(
                pl.BlockSpec((tm, 1), lambda i, j: (i, 0)),
                pl.BlockSpec((1, 1, tn), lambda i, j: (i, 0, j)),
            ),
        ),
        compiler_params=pltpu.CompilerParams(
            dimension_semantics=("parallel", "arbitrary"),
            vmem_limit_bytes=vmem_limit,
            allow_input_fusion=[True, True, True, True]),
        cost_estimate=cost,
    )(img_o, txt_o, img_n, txt_n)

    # Tiny final reduce on N floats; fold (1/N) and the final 0.5 into one scale.
    col_sums = jnp.sum(col_partials[:, 0, :n], axis=0)              # (n,)
    out = (row_sums[:n, 0] + col_sums) * (0.5 / n)
    return out


if __name__ == "__main__":
    def _reference(img_o, txt_o, img_n, txt_n):
        cos_o = img_o @ txt_o.T
        cos_n = img_n @ txt_n.T
        loss = (cos_n - cos_o) ** 2
        return (loss.mean(axis=0) + loss.mean(axis=1)) / 2.0

    def _bf16(x):
        return x.astype(jnp.bfloat16).astype(jnp.float32)

    def _unit_norm(x):
        return x / jnp.linalg.norm(x, axis=-1, keepdims=True)

    def _make(key, n, d):
        ks = jax.random.split(key, 4)
        return [_unit_norm(jax.random.normal(k, (n, d), dtype=jnp.float32))
                for k in ks]

    key = jax.random.PRNGKey(0)

    # 1) Small CLIP-like shapes: batch = 8, hidden = 32 (single-tile grid).
    k1, key = jax.random.split(key)
    img_o, txt_o, img_n, txt_n = _make(k1, 8, 32)
    out = reconstruction_loss(img_o, txt_o, img_n, txt_n)
    jax.block_until_ready(out)
    assert out.shape == (8,)
    ref_bf16 = _reference(_bf16(img_o), _bf16(txt_o), _bf16(img_n), _bf16(txt_n))
    ref_f32 = _reference(img_o, txt_o, img_n, txt_n)
    assert jnp.allclose(out, ref_bf16, atol=1e-4, rtol=1e-3), (out, ref_bf16)
    assert jnp.allclose(out, ref_f32, atol=2e-3, rtol=5e-2), (out, ref_f32)

    # 2) Unaligned shapes with small explicit tiles: multi-tile grid, both
    #    accumulation paths, zero-padding of N, unpadded odd D (=40).
    k2, key = jax.random.split(key)
    img_o2, txt_o2, img_n2, txt_n2 = _make(k2, 160, 40)
    out2 = reconstruction_loss(img_o2, txt_o2, img_n2, txt_n2,
                               tile_m=64, tile_n=128)
    jax.block_until_ready(out2)
    assert out2.shape == (160,)
    ref2 = _reference(_bf16(img_o2), _bf16(txt_o2), _bf16(img_n2), _bf16(txt_n2))
    assert jnp.allclose(out2, ref2, atol=1e-4, rtol=1e-3), \
        float(jnp.max(jnp.abs(out2 - ref2)))

    # 3) Default tiles with N that triggers the >=2 row-tile cap and N-padding.
    k3, key = jax.random.split(key)
    img_o3, txt_o3, img_n3, txt_n3 = _make(k3, 200, 64)
    out3 = reconstruction_loss(img_o3, txt_o3, img_n3, txt_n3)
    jax.block_until_ready(out3)
    assert out3.shape == (200,)
    ref3 = _reference(_bf16(img_o3), _bf16(txt_o3), _bf16(img_n3), _bf16(txt_n3))
    assert jnp.allclose(out3, ref3, atol=1e-4, rtol=1e-3), \
        float(jnp.max(jnp.abs(out3 - ref3)))

    print("KERNEL_OK")
</pallas_src>

<mosaic_0001>
module attributes {stable_mosaic.version = 11 : i64} {
  func.func @_recon_loss_kernel(%arg0: i32, %arg1: i32, %arg2: memref<16x32xbf16, #tpu.memory_space<vmem>>, %arg3: memref<128x32xbf16, #tpu.memory_space<vmem>>, %arg4: memref<16x32xbf16, #tpu.memory_space<vmem>>, %arg5: memref<128x32xbf16, #tpu.memory_space<vmem>>, %arg6: memref<16x1xf32, #tpu.memory_space<vmem>>, %arg7: memref<1x1x128xf32, #tpu.memory_space<vmem>>) attributes {dimension_semantics = [#tpu.dimension_semantics<parallel>, #tpu.dimension_semantics<arbitrary>], iteration_bounds = array<i64: 1, 1>, scalar_prefetch = 0 : i64, scratch_operands = 0 : i64, tpu.core_type = #tpu.core_type<tc>, window_params = [{transform_indices = @transform_0, window_bounds = array<i64: 16, 32>}, {transform_indices = @transform_1, window_bounds = array<i64: 128, 32>}, {transform_indices = @transform_2, window_bounds = array<i64: 16, 32>}, {transform_indices = @transform_3, window_bounds = array<i64: 128, 32>}, {transform_indices = @transform_4, window_bounds = array<i64: 16, 1>}, {transform_indices = @transform_5, window_bounds = array<i64: 1, 1, 128>}]} {
    %c0 = arith.constant 0 : index
    %c0_0 = arith.constant 0 : index
    %0 = vector.load %arg4[%c0, %c0_0] : memref<16x32xbf16, #tpu.memory_space<vmem>>, vector<16x32xbf16>
    %c0_1 = arith.constant 0 : index
    %c0_2 = arith.constant 0 : index
    %1 = vector.load %arg5[%c0_1, %c0_2] : memref<128x32xbf16, #tpu.memory_space<vmem>>, vector<128x32xbf16>
    %cst = arith.constant dense<0.000000e+00> : vector<16x128xf32>
    %2 = tpu.matmul %0, %1, %cst {dimension_numbers = #tpu.dot_dimension_numbers<[1], [1], [0], [0], [0, 0, 1, 0], [], []>} : vector<16x32xbf16>, vector<128x32xbf16>, vector<16x128xf32> -> vector<16x128xf32>
    %c0_3 = arith.constant 0 : index
    %c0_4 = arith.constant 0 : index
    %3 = vector.load %arg2[%c0_3, %c0_4] : memref<16x32xbf16, #tpu.memory_space<vmem>>, vector<16x32xbf16>
    %c0_5 = arith.constant 0 : index
    %c0_6 = arith.constant 0 : index
    %4 = vector.load %arg3[%c0_5, %c0_6] : memref<128x32xbf16, #tpu.memory_space<vmem>>, vector<128x32xbf16>
    %cst_7 = arith.constant dense<0.000000e+00> : vector<16x128xf32>
    %5 = tpu.matmul %3, %4, %cst_7 {dimension_numbers = #tpu.dot_dimension_numbers<[1], [1], [0], [0], [0, 0, 1, 0], [], []>} : vector<16x32xbf16>, vector<128x32xbf16>, vector<16x128xf32> -> vector<16x128xf32>
    %6 = arith.subf %2, %5 : vector<16x128xf32>
    %7 = arith.mulf %6, %6 : vector<16x128xf32>
    %cst_8 = arith.constant dense<0.000000e+00> : vector<128xf32>
    %8 = vector.multi_reduction <add>, %7, %cst_8 [0] : vector<16x128xf32> to vector<128xf32>
    %9 = vector.shape_cast %8 : vector<128xf32> to vector<1x128xf32>
    %10 = vector.shape_cast %9 : vector<1x128xf32> to vector<1x1x128xf32>
    %c0_9 = arith.constant 0 : index
    %c0_10 = arith.constant 0 : index
    %c0_11 = arith.constant 0 : index
    %11 = vector.load %arg7[%c0_9, %c0_10, %c0_11] : memref<1x1x128xf32, #tpu.memory_space<vmem>>, vector<1x1x128xf32>
    tpu.vector_store %arg7[%c0_9, %c0_10, %c0_11], %10 {strides = array<i32>} : memref<1x1x128xf32, #tpu.memory_space<vmem>>, vector<1x1x128xf32>,
    %cst_12 = arith.constant dense<0.000000e+00> : vector<16xf32>
    %12 = vector.multi_reduction <add>, %7, %cst_12 [1] : vector<16x128xf32> to vector<16xf32>
    %13 = vector.shape_cast %12 : vector<16xf32> to vector<16x1xf32>
    %c0_i32 = arith.constant 0 : i32
    %14 = arith.cmpi eq, %arg1, %c0_i32 : i32
    %15 = arith.extui %14 : i1 to i32
    %c0_i32_13 = arith.constant 0 : i32
    %16 = arith.cmpi ne, %15, %c0_i32_13 : i32
    scf.if %16 {
      %c0_16 = arith.constant 0 : index
      %c0_17 = arith.constant 0 : index
      %20 = vector.load %arg6[%c0_16, %c0_17] : memref<16x1xf32, #tpu.memory_space<vmem>>, vector<16x1xf32>
      tpu.vector_store %arg6[%c0_16, %c0_17], %13 {strides = array<i32>} : memref<16x1xf32, #tpu.memory_space<vmem>>, vector<16x1xf32>,
    } else {
    }
    %c0_i32_14 = arith.constant 0 : i32
    %17 = arith.cmpi sgt, %arg1, %c0_i32_14 : i32
    %18 = arith.extui %17 : i1 to i32
    %c0_i32_15 = arith.constant 0 : i32
    %19 = arith.cmpi ne, %18, %c0_i32_15 : i32
    scf.if %19 {
      %c0_16 = arith.constant 0 : index
      %c0_17 = arith.constant 0 : index
      %20 = vector.load %arg6[%c0_16, %c0_17] : memref<16x1xf32, #tpu.memory_space<vmem>>, vector<16x1xf32>
      %21 = arith.addf %20, %13 : vector<16x1xf32>
      %c0_18 = arith.constant 0 : index
      %c0_19 = arith.constant 0 : index
      %22 = vector.load %arg6[%c0_18, %c0_19] : memref<16x1xf32, #tpu.memory_space<vmem>>, vector<16x1xf32>
      tpu.vector_store %arg6[%c0_18, %c0_19], %21 {strides = array<i32>} : memref<16x1xf32, #tpu.memory_space<vmem>>, vector<16x1xf32>,
    } else {
    }
    return
  }
  func.func @transform_0(%arg0: i32, %arg1: i32) -> (i32, i32) {
    %c0_i32 = arith.constant 0 : i32
    %c0_i32_0 = arith.constant 0 : i32
    return %arg0, %c0_i32 : i32, i32
  }
  func.func @transform_1(%arg0: i32, %arg1: i32) -> (i32, i32) {
    %c0_i32 = arith.constant 0 : i32
    %c0_i32_0 = arith.constant 0 : i32
    return %arg1, %c0_i32 : i32, i32
  }
  func.func @transform_2(%arg0: i32, %arg1: i32) -> (i32, i32) {
    %c0_i32 = arith.constant 0 : i32
    %c0_i32_0 = arith.constant 0 : i32
    return %arg0, %c0_i32 : i32, i32
  }
  func.func @transform_3(%arg0: i32, %arg1: i32) -> (i32, i32) {
    %c0_i32 = arith.constant 0 : i32
    %c0_i32_0 = arith.constant 0 : i32
    return %arg1, %c0_i32 : i32, i32
  }
  func.func @transform_4(%arg0: i32, %arg1: i32) -> (i32, i32) {
    %c0_i32 = arith.constant 0 : i32
    %c0_i32_0 = arith.constant 0 : i32
    return %arg0, %c0_i32 : i32, i32
  }
  func.func @transform_5(%arg0: i32, %arg1: i32) -> (i32, i32, i32) {
    %c0_i32 = arith.constant 0 : i32
    %c0_i32_0 = arith.constant 0 : i32
    return %arg0, %c0_i32, %arg1 : i32, i32, i32
  }
}

</mosaic_0001>

<llo_original>
// kernel: reconstruction_loss.2
$region0: #{reconstruction_loss.2}
  #allocation0 [shape = 'u32[]', space=smem, size = 0x4, offset = 0x4, fixed_abs, tag = 'smem constant byte address 0x4 - core index']
  #allocation1 [shape = 'u32[72,128]{1,0:T(1,128)}', space=vmem, size = 0x9000, scoped, tag = 'internal scratch']
  #allocation2 [shape = 'u32[2048]{0}', space=vmem, size = 0x2000, scoped, tag = 'scoped memory for reconstruction_loss.2']
  #allocation3 [shape = 'u32[2048]{0}', space=vmem, size = 0x2000, scoped, tag = 'scoped memory for reconstruction_loss.2']
  #allocation4 [shape = 'u32[2048]{0}', space=vmem, size = 0x2000, scoped, tag = 'scoped memory for reconstruction_loss.2']
  #allocation5 [shape = 'u32[2048]{0}', space=vmem, size = 0x2000, scoped, tag = 'scoped memory for reconstruction_loss.2']
  #allocation6 [shape = 'u32[2048]{0}', space=vmem, size = 0x2000, scoped, tag = 'scoped memory for reconstruction_loss.2']
  #allocation7 [shape = 'u32[2048]{0}', space=vmem, size = 0x2000, scoped, tag = 'scoped memory for reconstruction_loss.2']
  #allocation8 [shape = 'u32[2048]{0}', space=vmem, size = 0x2000, scoped, tag = 'scoped memory for reconstruction_loss.2']
  #allocation9 [shape = 'u32[2048]{0}', space=vmem, size = 0x2000, scoped, tag = 'scoped memory for reconstruction_loss.2']
  #allocation10 [shape = 'u32[2048]{0}', space=vmem, size = 0x2000, scoped, tag = 'scoped memory for reconstruction_loss.2']
  #allocation11 [shape = 'u32[2048]{0}', space=vmem, size = 0x2000, scoped, tag = 'scoped memory for reconstruction_loss.2']
  #allocation12 [shape = 'u32[2048]{0}', space=vmem, size = 0x2000, scoped, tag = 'scoped memory for reconstruction_loss.2']
  #allocation13 [shape = 'u32[2048]{0}', space=vmem, size = 0x2000, scoped, tag = 'scoped memory for reconstruction_loss.2']
  #allocation14 [shape = 'u32[2048]{0}', space=vmem, size = 0x2000, scoped, tag = 'scoped memory for reconstruction_loss.2']
  #allocation15 [shape = 'u32[2048]{0}', space=vmem, size = 0x2000, scoped, tag = 'scoped memory for reconstruction_loss.2']
  #allocation16 [shape = 'u32[2048]{0}', space=vmem, size = 0x2000, scoped, tag = 'scoped memory for reconstruction_loss.2']
  #allocation17 [shape = 'u32[2048]{0}', space=vmem, size = 0x2000, scoped, tag = 'scoped memory for reconstruction_loss.2']
  #allocation18 [shape = 'u32[2048]{0}', space=vmem, size = 0x2000, scoped, tag = 'scoped memory for reconstruction_loss.2']
  #allocation19 [shape = 'u32[2048]{0}', space=vmem, size = 0x2000, scoped, tag = 'scoped memory for reconstruction_loss.2']
  #allocation20 [shape = 'u32[2048]{0}', space=vmem, size = 0x2000, scoped, tag = 'scoped memory for reconstruction_loss.2']
  #allocation21 [shape = 'u32[2048]{0}', space=vmem, size = 0x2000, scoped, tag = 'scoped memory for reconstruction_loss.2']
  %s0 = inlined_call_operand.vmem [shape: bf16[8,32], index: 0, kind: input, shape index: {}]
  %s1 = inlined_call_operand.<no memory space> [shape: bf16[], index: 1, kind: input, shape index: {}]
  %s2 = inlined_call_operand.vmem [shape: bf16[8,32], index: 2, kind: input, shape index: {}]
  %s3 = inlined_call_operand.vmem [shape: bf16[8,32], index: 3, kind: input, shape index: {}]
  %s4 = inlined_call_operand.vmem [shape: bf16[8,32], index: 4, kind: input, shape index: {}]
  %s5 = inlined_call_operand.vmem [shape: f32[16,1], index: 5, kind: output, shape index: {0}]
  %s6 = inlined_call_operand.vmem [shape: f32[1,1,128], index: 6, kind: output, shape index: {1}]
  %7 = xla_tuple %s5, %s6
  %s8 = sld [smem:[#allocation0]]
  $region42: #{reconstruction_loss.2} parent=0
    _
  %s10 = ssub.s32 1, %s8
  %s11 = scalar_select 0, %s10, %s8
  %v12 = vstv %s1
  %v13 = vunpack.i.l.bf16 %v12
  %v15 = vunpack.i.h.bf16 %v12
  %v17 = vstv %s1
  %v18 = vunpack.i.l.bf16 %v17
  %v20 = vunpack.i.h.bf16 %v17
  %v22 = vstv %s1
  %v23 = vunpack.i.l.bf16 %v22
  %v25 = vunpack.i.h.bf16 %v22
  %v27 = vstv %s1
  %v28 = vunpack.i.l.bf16 %v27
  %v30 = vunpack.i.h.bf16 %v27
  $region1: #{reconstruction_loss.2} parent=0
    #allocation22 [shape = 'u8[4096]{0}', space=vmem, size = 0x1000, dematerialized = true, scoped, tag = 'FusionAdapter Buffer %fusion.4 = bf16[16,32]{1,0:T(8,128)(2,1)} fusion(%param_4.3, %param_1.6), kind=kLoop, calls=%fused_computation.4.clone, metadata={op_name="jit(reconstruction_loss)/jit(_pad)/pad" stack_frame_id=11}']
    #allocation23 [shape = 'u8[32768]{0}', space=vmem, size = 0x8000, dematerialized = true, scoped, tag = 'FusionAdapter Buffer %fusion.2 = bf16[128,32]{1,0:T(8,128)(2,1)} fusion(%param_2.3, %param_1.6), kind=kLoop, calls=%fused_computation.2.clone, metadata={op_name="jit(reconstruction_loss)/jit(_pad)/pad" stack_frame_id=19}']
    #allocation24 [shape = 'u8[4096]{0}', space=vmem, size = 0x1000, dematerialized = true, scoped, tag = 'FusionAdapter Buffer %fusion.3 = bf16[16,32]{1,0:T(8,128)(2,1)} fusion(%param_3.4, %param_1.6), kind=kLoop, calls=%fused_computation.3.clone, metadata={op_name="jit(reconstruction_loss)/jit(_pad)/pad" stack_frame_id=15}']
    #allocation25 [shape = 'u8[32768]{0}', space=vmem, size = 0x8000, dematerialized = true, scoped, tag = 'FusionAdapter Buffer %fusion.1 = bf16[128,32]{1,0:T(8,128)(2,1)} fusion(%param_0.4, %param_1.6), kind=kLoop, calls=%fused_computation.1.clone, metadata={op_name="jit(reconstruction_loss)/jit(_pad)/pad" stack_frame_id=23}']
    // Predicated region
    $region2: #{reconstruction_loss.2} parent=1 // pred_check
      _
    $region3: #{reconstruction_loss.2} parent=1 // pred_check_branch
      %33 = sbr.rel (0) target = $region5
    $region4: #{reconstruction_loss.2} parent=1 // pred_region
      _
    $region5: #{reconstruction_loss.2} parent=1 // pred_fallthru
      _
    // Predicated region
    $region6: #{reconstruction_loss.2} parent=1 // pred_check
      _
    $region7: #{reconstruction_loss.2} parent=1 // pred_check_branch
      %35 = sbr.rel (0) target = $region9
    $region8: #{reconstruction_loss.2} parent=1 // pred_region
      _
    $region9: #{reconstruction_loss.2} parent=1 // pred_fallthru
      _
    // Predicated region
    $region10: #{reconstruction_loss.2} parent=1 // pred_check
      _
    $region11: #{reconstruction_loss.2} parent=1 // pred_check_branch
      %37 = sbr.rel (0) target = $region13
    $region12: #{reconstruction_loss.2} parent=1 // pred_region
      _
    $region13: #{reconstruction_loss.2} parent=1 // pred_fallthru
      _
    // Predicated region
    $region14: #{reconstruction_loss.2} parent=1 // pred_check
      _
    $region15: #{reconstruction_loss.2} parent=1 // pred_check_branch
      %39 = sbr.rel (0) target = $region17
    $region16: #{reconstruction_loss.2} parent=1 // pred_region
      _
    $region17: #{reconstruction_loss.2} parent=1 // pred_fallthru
      _
    %s41 = sor.u32 255, 127
    %s42 = sand.u32 %s41, 85
    %s43 = sshrl.u32 %s42, 1
    %s44 = sor.u32 %s42, %s43
    %s45 = sand.u32 51, %s44
    %s46 = sshrl.u32 %s45, 2
    %s47 = sor.u32 %s45, %s46
    %s48 = sand.u32 15, %s47
    %v49 = vld [vmem:[%s4] sm:%s48]
    %v50 = vunpack.c.l.bf16 %v49
    %v51 = vunpack.c.h.bf16 %v49
    %v52 = vlaneseq
    %v53 = vand.u32 %v52, 127
    %vm55 = vcmp.lt.s32.totalorder %v53, 32
    %v56 = vsel %vm55, %v50, %v13
    %v57 = vpack.c.bf16 0.0, %v56
    %s59 = ssub.s32 16, 1
    %60 = vst [vmem:[#allocation22] sm:%s59] %v57
    %s61 = scalar_lea.vmem [#allocation22], 4
    %v62 = vpack.c.bf16 0.0, %v13
    %s64 = ssub.s32 16, 1
    %65 = vst [vmem:[%s61] sm:%s64] %v62
    %s67 = sor.u32 255, 127
    %s68 = sand.u32 %s67, 85
    %s69 = sshrl.u32 %s68, 1
    %s70 = sor.u32 %s68, %s69
    %s71 = sand.u32 51, %s70
    %s72 = sshrl.u32 %s71, 2
    %s73 = sor.u32 %s71, %s72
    %s74 = sand.u32 15, %s73
    %v75 = vld [vmem:[%s2] sm:%s74]
    %v76 = vunpack.c.l.bf16 %v75
    %v77 = vunpack.c.h.bf16 %v75
    %v78 = vlaneseq
    %v79 = vand.u32 %v78, 127
    %vm81 = vcmp.lt.s32.totalorder %v79, 32
    %v82 = vsel %vm81, %v76, %v18
    %v83 = vpack.c.bf16 0.0, %v82
    %s85 = ssub.s32 16, 1
    %86 = vst [vmem:[#allocation23] sm:%s85] %v83
    %s87 = scalar_lea.vmem [#allocation23], 4
    %v88 = vpack.c.bf16 0.0, %v18
    %s90 = ssub.s32 16, 1
    %91 = vst [vmem:[%s87] sm:%s90] %v88
    %s92 = scalar_lea.vmem [#allocation23], 8
    %v93 = vpack.c.bf16 0.0, %v18
    %s95 = ssub.s32 16, 1
    %96 = vst [vmem:[%s92] sm:%s95] %v93
    %s97 = scalar_lea.vmem [#allocation23], 12
    %v98 = vpack.c.bf16 0.0, %v18
    %s100 = ssub.s32 16, 1
    %101 = vst [vmem:[%s97] sm:%s100] %v98
    %s102 = scalar_lea.vmem [#allocation23], 16
    %v103 = vpack.c.bf16 0.0, %v18
    %s105 = ssub.s32 16, 1
    %106 = vst [vmem:[%s102] sm:%s105] %v103
    %s107 = scalar_lea.vmem [#allocation23], 20
    %v108 = vpack.c.bf16 0.0, %v18
    %s110 = ssub.s32 16, 1
    %111 = vst [vmem:[%s107] sm:%s110] %v108
    %s112 = scalar_lea.vmem [#allocation23], 24
    %v113 = vpack.c.bf16 0.0, %v18
    %s115 = ssub.s32 16, 1
    %116 = vst [vmem:[%s112] sm:%s115] %v113
    %s117 = scalar_lea.vmem [#allocation23], 28
    %v118 = vpack.c.bf16 0.0, %v18
    %s120 = ssub.s32 16, 1
    %121 = vst [vmem:[%s117] sm:%s120] %v118
    %s122 = scalar_lea.vmem [#allocation23], 32
    %v123 = vpack.c.bf16 0.0, %v18
    %s125 = ssub.s32 16, 1
    %126 = vst [vmem:[%s122] sm:%s125] %v123
    %s127 = scalar_lea.vmem [#allocation23], 36
    %v128 = vpack.c.bf16 0.0, %v18
    %s130 = ssub.s32 16, 1
    %131 = vst [vmem:[%s127] sm:%s130] %v128
    %s132 = scalar_lea.vmem [#allocation23], 40
    %v133 = vpack.c.bf16 0.0, %v18
    %s135 = ssub.s32 16, 1
    %136 = vst [vmem:[%s132] sm:%s135] %v133
    %s137 = scalar_lea.vmem [#allocation23], 44
    %v138 = vpack.c.bf16 0.0, %v18
    %s140 = ssub.s32 16, 1
    %141 = vst [vmem:[%s137] sm:%s140] %v138
    %s142 = scalar_lea.vmem [#allocation23], 48
    %v143 = vpack.c.bf16 0.0, %v18
    %s145 = ssub.s32 16, 1
    %146 = vst [vmem:[%s142] sm:%s145] %v143
    %s147 = scalar_lea.vmem [#allocation23], 52
    %v148 = vpack.c.bf16 0.0, %v18
    %s150 = ssub.s32 16, 1
    %151 = vst [vmem:[%s147] sm:%s150] %v148
    %s152 = scalar_lea.vmem [#allocation23], 56
    %v153 = vpack.c.bf16 0.0, %v18
    %s155 = ssub.s32 16, 1
    %156 = vst [vmem:[%s152] sm:%s155] %v153
    %s157 = scalar_lea.vmem [#allocation23], 60
    %v158 = vpack.c.bf16 0.0, %v18
    %s160 = ssub.s32 16, 1
    %161 = vst [vmem:[%s157] sm:%s160] %v158
    %s163 = sor.u32 255, 127
    %s164 = sand.u32 %s163, 85
    %s165 = sshrl.u32 %s164, 1
    %s166 = sor.u32 %s164, %s165
    %s167 = sand.u32 51, %s166
    %s168 = sshrl.u32 %s167, 2
    %s169 = sor.u32 %s167, %s168
    %s170 = sand.u32 15, %s169
    %v171 = vld [vmem:[%s3] sm:%s170]
    %v172 = vunpack.c.l.bf16 %v171
    %v173 = vunpack.c.h.bf16 %v171
    %v174 = vlaneseq
    %v175 = vand.u32 %v174, 127
    %vm177 = vcmp.lt.s32.totalorder %v175, 32
    %v178 = vsel %vm177, %v172, %v23
    %v179 = vpack.c.bf16 0.0, %v178
    %s181 = ssub.s32 16, 1
    %182 = vst [vmem:[#allocation24] sm:%s181] %v179
    %s183 = scalar_lea.vmem [#allocation24], 4
    %v184 = vpack.c.bf16 0.0, %v23
    %s186 = ssub.s32 16, 1
    %187 = vst [vmem:[%s183] sm:%s186] %v184
    %s189 = sor.u32 255, 127
    %s190 = sand.u32 %s189, 85
    %s191 = sshrl.u32 %s190, 1
    %s192 = sor.u32 %s190, %s191
    %s193 = sand.u32 51, %s192
    %s194 = sshrl.u32 %s193, 2
    %s195 = sor.u32 %s193, %s194
    %s196 = sand.u32 15, %s195
    %v197 = vld [vmem:[%s0] sm:%s196]
    %v198 = vunpack.c.l.bf16 %v197
    %v199 = vunpack.c.h.bf16 %v197
    %v200 = vlaneseq
    %v201 = vand.u32 %v200, 127
    %vm203 = vcmp.lt.s32.totalorder %v201, 32
    %v204 = vsel %vm203, %v198, %v28
    %v205 = vpack.c.bf16 0.0, %v204
    %s207 = ssub.s32 16, 1
    %208 = vst [vmem:[#allocation25] sm:%s207] %v205
    %s209 = scalar_lea.vmem [#allocation25], 4
    %v210 = vpack.c.bf16 0.0, %v28
    %s212 = ssub.s32 16, 1
    %213 = vst [vmem:[%s209] sm:%s212] %v210
    %s214 = scalar_lea.vmem [#allocation25], 8
    %v215 = vpack.c.bf16 0.0, %v28
    %s217 = ssub.s32 16, 1
    %218 = vst [vmem:[%s214] sm:%s217] %v215
    %s219 = scalar_lea.vmem [#allocation25], 12
    %v220 = vpack.c.bf16 0.0, %v28
    %s222 = ssub.s32 16, 1
    %223 = vst [vmem:[%s219] sm:%s222] %v220
    %s224 = scalar_lea.vmem [#allocation25], 16
    %v225 = vpack.c.bf16 0.0, %v28
    %s227 = ssub.s32 16, 1
    %228 = vst [vmem:[%s224] sm:%s227] %v225
    %s229 = scalar_lea.vmem [#allocation25], 20
    %v230 = vpack.c.bf16 0.0, %v28
    %s232 = ssub.s32 16, 1
    %233 = vst [vmem:[%s229] sm:%s232] %v230
    %s234 = scalar_lea.vmem [#allocation25], 24
    %v235 = vpack.c.bf16 0.0, %v28
    %s237 = ssub.s32 16, 1
    %238 = vst [vmem:[%s234] sm:%s237] %v235
    %s239 = scalar_lea.vmem [#allocation25], 28
    %v240 = vpack.c.bf16 0.0, %v28
    %s242 = ssub.s32 16, 1
    %243 = vst [vmem:[%s239] sm:%s242] %v240
    %s244 = scalar_lea.vmem [#allocation25], 32
    %v245 = vpack.c.bf16 0.0, %v28
    %s247 = ssub.s32 16, 1
    %248 = vst [vmem:[%s244] sm:%s247] %v245
    %s249 = scalar_lea.vmem [#allocation25], 36
    %v250 = vpack.c.bf16 0.0, %v28
    %s252 = ssub.s32 16, 1
    %253 = vst [vmem:[%s249] sm:%s252] %v250
    %s254 = scalar_lea.vmem [#allocation25], 40
    %v255 = vpack.c.bf16 0.0, %v28
    %s257 = ssub.s32 16, 1
    %258 = vst [vmem:[%s254] sm:%s257] %v255
    %s259 = scalar_lea.vmem [#allocation25], 44
    %v260 = vpack.c.bf16 0.0, %v28
    %s262 = ssub.s32 16, 1
    %263 = vst [vmem:[%s259] sm:%s262] %v260
    %s264 = scalar_lea.vmem [#allocation25], 48
    %v265 = vpack.c.bf16 0.0, %v28
    %s267 = ssub.s32 16, 1
    %268 = vst [vmem:[%s264] sm:%s267] %v265
    %s269 = scalar_lea.vmem [#allocation25], 52
    %v270 = vpack.c.bf16 0.0, %v28
    %s272 = ssub.s32 16, 1
    %273 = vst [vmem:[%s269] sm:%s272] %v270
    %s274 = scalar_lea.vmem [#allocation25], 56
    %v275 = vpack.c.bf16 0.0, %v28
    %s277 = ssub.s32 16, 1
    %278 = vst [vmem:[%s274] sm:%s277] %v275
    %s279 = scalar_lea.vmem [#allocation25], 60
    %v280 = vpack.c.bf16 0.0, %v28
    %s282 = ssub.s32 16, 1
    %283 = vst [vmem:[%s279] sm:%s282] %v280
    %v284 = vld [vmem:[#allocation24] sm:$0xf]
    %v285 = vld [vmem:[#allocation24 + $0x4] sm:$0xf]
    %v286 = vld [vmem:[#allocation25] sm:$0xf]
    %v287 = vld [vmem:[#allocation25 + $0x4] sm:$0xf]
    %v288 = vld [vmem:[#allocation25 + $0x8] sm:$0xf]
    %v289 = vld [vmem:[#allocation25 + $0xc] sm:$0xf]
    %v290 = vld [vmem:[#allocation25 + $0x10] sm:$0xf]
    %v291 = vld [vmem:[#allocation25 + $0x14] sm:$0xf]
    %v292 = vld [vmem:[#allocation25 + $0x18] sm:$0xf]
    %v293 = vld [vmem:[#allocation25 + $0x1c] sm:$0xf]
    %v294 = vld [vmem:[#allocation25 + $0x20] sm:$0xf]
    %v295 = vld [vmem:[#allocation25 + $0x24] sm:$0xf]
    %v296 = vld [vmem:[#allocation25 + $0x28] sm:$0xf]
    %v297 = vld [vmem:[#allocation25 + $0x2c] sm:$0xf]
    %v298 = vld [vmem:[#allocation25 + $0x30] sm:$0xf]
    %v299 = vld [vmem:[#allocation25 + $0x34] sm:$0xf]
    %v300 = vld [vmem:[#allocation25 + $0x38] sm:$0xf]
    %v301 = vld [vmem:[#allocation25 + $0x3c] sm:$0xf]
    %v304 = vunpack.c.l.b16 %v284
    %v305 = vunpack.c.l.b16 %v285
    %v306 = vpack.c.b16 %v305, %v304
    %v323 = vunpack.c.l.b16 %v286
    %v324 = vunpack.c.l.b16 %v287
    %v325 = vunpack.c.l.b16 %v288
    %v326 = vunpack.c.l.b16 %v289
    %v327 = vunpack.c.l.b16 %v290
    %v328 = vunpack.c.l.b16 %v291
    %v329 = vunpack.c.l.b16 %v292
    %v330 = vunpack.c.l.b16 %v293
    %v331 = vunpack.c.l.b16 %v294
    %v332 = vunpack.c.l.b16 %v295
    %v333 = vunpack.c.l.b16 %v296
    %v334 = vunpack.c.l.b16 %v297
    %v335 = vunpack.c.l.b16 %v298
    %v336 = vunpack.c.l.b16 %v299
    %v337 = vunpack.c.l.b16 %v300
    %v338 = vunpack.c.l.b16 %v301
    %v339 = vpack.c.b16 %v324, %v323
    %v340 = vpack.c.b16 %v326, %v325
    %v341 = vpack.c.b16 %v328, %v327
    %v342 = vpack.c.b16 %v330, %v329
    %v343 = vpack.c.b16 %v332, %v331
    %v344 = vpack.c.b16 %v334, %v333
    %v345 = vpack.c.b16 %v336, %v335
    %v346 = vpack.c.b16 %v338, %v337
    %vm347 = vcmask 261120
    %v349 = vsel %vm347, %v306, 0
    %v352 = vsel %vm347, %v339, 0
    %v355 = vsel %vm347, %v340, 0
    %v358 = vsel %vm347, %v341, 0
    %v361 = vsel %vm347, %v342, 0
    %v364 = vsel %vm347, %v343, 0
    %v367 = vsel %vm347, %v344, 0
    %v370 = vsel %vm347, %v345, 0
    %v373 = vsel %vm347, %v346, 0
    %375 = vmatpush.bf16.xpose.msra.mxu0 %v373
    %376 = vmatpush.bf16.xpose.msra.mxu0 %v370
    %377 = vmatpush.bf16.xpose.msra.mxu0 %v367
    %378 = vmatpush.bf16.xpose.msra.mxu0 %v364
    %379 = vmatpush.bf16.xpose.msra.mxu0 %v361
    %380 = vmatpush.bf16.xpose.msra.mxu0 %v358
    %381 = vmatpush.bf16.xpose.msra.mxu0 %v355
    %382 = vmatpush.bf16.xpose.msra.mxu0 %v352
    %383 = vmatmul.bf16.gmra.mxu0 %v349
    %v384 = vpop.f32.mrf.mxu0
    %v385 = vadd.f32 0.0, %v384
    %v386 = vpop.f32.mrf.mxu0
    %v387 = vadd.f32 0.0, %v386
    %388 = vdwg.mxu0
    %v389 = vld [vmem:[#allocation22] sm:$0xf]
    %v390 = vld [vmem:[#allocation22 + $0x4] sm:$0xf]
    %v391 = vld [vmem:[#allocation23] sm:$0xf]
    %v392 = vld [vmem:[#allocation23 + $0x4] sm:$0xf]
    %v393 = vld [vmem:[#allocation23 + $0x8] sm:$0xf]
    %v394 = vld [vmem:[#allocation23 + $0xc] sm:$0xf]
    %v395 = vld [vmem:[#allocation23 + $0x10] sm:$0xf]
    %v396 = vld [vmem:[#allocation23 + $0x14] sm:$0xf]
    %v397 = vld [vmem:[#allocation23 + $0x18] sm:$0xf]
    %v398 = vld [vmem:[#allocation23 + $0x1c] sm:$0xf]
    %v399 = vld [vmem:[#allocation23 + $0x20] sm:$0xf]
    %v400 = vld [vmem:[#allocation23 + $0x24] sm:$0xf]
    %v401 = vld [vmem:[#allocation23 + $0x28] sm:$0xf]
    %v402 = vld [vmem:[#allocation23 + $0x2c] sm:$0xf]
    %v403 = vld [vmem:[#allocation23 + $0x30] sm:$0xf]
    %v404 = vld [vmem:[#allocation23 + $0x34] sm:$0xf]
    %v405 = vld [vmem:[#allocation23 + $0x38] sm:$0xf]
    %v406 = vld [vmem:[#allocation23 + $0x3c] sm:$0xf]
    %v409 = vunpack.c.l.b16 %v389
    %v410 = vunpack.c.l.b16 %v390
    %v411 = vpack.c.b16 %v410, %v409
    %v428 = vunpack.c.l.b16 %v391
    %v429 = vunpack.c.l.b16 %v392
    %v430 = vunpack.c.l.b16 %v393
    %v431 = vunpack.c.l.b16 %v394
    %v432 = vunpack.c.l.b16 %v395
    %v433 = vunpack.c.l.b16 %v396
    %v434 = vunpack.c.l.b16 %v397
    %v435 = vunpack.c.l.b16 %v398
    %v436 = vunpack.c.l.b16 %v399
    %v437 = vunpack.c.l.b16 %v400
    %v438 = vunpack.c.l.b16 %v401
    %v439 = vunpack.c.l.b16 %v402
    %v440 = vunpack.c.l.b16 %v403
    %v441 = vunpack.c.l.b16 %v404
    %v442 = vunpack.c.l.b16 %v405
    %v443 = vunpack.c.l.b16 %v406
    %v444 = vpack.c.b16 %v429, %v428
    %v445 = vpack.c.b16 %v431, %v430
    %v446 = vpack.c.b16 %v433, %v432
    %v447 = vpack.c.b16 %v435, %v434
    %v448 = vpack.c.b16 %v437, %v436
    %v449 = vpack.c.b16 %v439, %v438
    %v450 = vpack.c.b16 %v441, %v440
    %v451 = vpack.c.b16 %v443, %v442
    %v453 = vsel %vm347, %v411, 0
    %v456 = vsel %vm347, %v444, 0
    %v459 = vsel %vm347, %v445, 0
    %v462 = vsel %vm347, %v446, 0
    %v465 = vsel %vm347, %v447, 0
    %v468 = vsel %vm347, %v448, 0
    %v471 = vsel %vm347, %v449, 0
    %v474 = vsel %vm347, %v450, 0
    %v477 = vsel %vm347, %v451, 0
    %479 = vmatpush.bf16.xpose.msra.mxu0 %v477
    %480 = vmatpush.bf16.xpose.msra.mxu0 %v474
    %481 = vmatpush.bf16.xpose.msra.mxu0 %v471
    %482 = vmatpush.bf16.xpose.msra.mxu0 %v468
    %483 = vmatpush.bf16.xpose.msra.mxu0 %v465
    %484 = vmatpush.bf16.xpose.msra.mxu0 %v462
    %485 = vmatpush.bf16.xpose.msra.mxu0 %v459
    %486 = vmatpush.bf16.xpose.msra.mxu0 %v456
    %487 = vmatmul.bf16.gmra.mxu0 %v453
    %v488 = vpop.f32.mrf.mxu0
    %v489 = vadd.f32 0.0, %v488
    %v490 = vpop.f32.mrf.mxu0
    %v491 = vadd.f32 0.0, %v490
    %492 = vdwg.mxu0
    %v493 = vsub.f32 %v385, %v489
    %v494 = vsub.f32 %v387, %v491
    %v495 = vmul.f32 %v493, %v493
    %v496 = vmul.f32 %v494, %v494
    %v497 = vadd.f32 %v495, %v496
    %v498 = vrot.slane %v497, 4
    %v499 = vadd.f32 %v497, %v498
    %v500 = vrot.slane %v499, 2
    %v501 = vadd.f32 %v499, %v500
    %v502 = vrot.slane %v501, 1
    %v503 = vadd.f32 %v501, %v502
    %504 = vst [vmem:[%s6] sm:$0x1] %v503
    %505 = vadd.xlane.f32.xlu0 %v495
    %v506 = vpop.xlane.xlu0 %505
    %507 = vadd.xlane.f32.xlu0 %v496
    %v508 = vpop.xlane.xlu0 %507
    %p509 = scmp.eq.s32.totalorder 0, 0
    // Predicated region
    $region18: #{reconstruction_loss.2} parent=1 // pred_check
      %p510 = pneg %p509
    $region19: #{reconstruction_loss.2} parent=1 // pred_check_branch
      %512 = sbr.rel (%p510) target = $region21
    $region20: #{reconstruction_loss.2} parent=1 // pred_region
      %vm513 = vcmask 7168
      %514 = vst.msk [vmem:[%s5] sm:$0xff] %vm513, %v506
      %515 = vst.msk [vmem:[%s5 + $0x8] sm:$0xff] %vm513, %v508
    $region21: #{reconstruction_loss.2} parent=1 // pred_fallthru
      _
    %p516 = scmp.gt.s32.totalorder 0, 0
    // Predicated region
    $region22: #{reconstruction_loss.2} parent=1 // pred_check
      %p517 = pneg %p516
    $region23: #{reconstruction_loss.2} parent=1 // pred_check_branch
      %519 = sbr.rel (%p517) target = $region25
    $region24: #{reconstruction_loss.2} parent=1 // pred_region
      %v520 = vld [vmem:[%s5] sm:$0xff]
      %v521 = vld [vmem:[%s5 + $0x8] sm:$0xff]
      %v522 = vadd.f32 %v520, %v506
      %v523 = vadd.f32 %v521, %v508
      %vm524 = vcmask 7168
      %525 = vst.msk [vmem:[%s5] sm:$0xff] %vm524, %v522
      %526 = vst.msk [vmem:[%s5 + $0x8] sm:$0xff] %vm524, %v523
    $region25: #{reconstruction_loss.2} parent=1 // pred_fallthru
      _
    // Predicated region
    $region26: #{reconstruction_loss.2} parent=1 // pred_check
      _
    $region27: #{reconstruction_loss.2} parent=1 // pred_check_branch
      %528 = sbr.rel (0) target = $region29
    $region28: #{reconstruction_loss.2} parent=1 // pred_region
      _
    $region29: #{reconstruction_loss.2} parent=1 // pred_fallthru
      _
    // Predicated region
    $region30: #{reconstruction_loss.2} parent=1 // pred_check
      _
    $region31: #{reconstruction_loss.2} parent=1 // pred_check_branch
      %530 = sbr.rel (0) target = $region33
    $region32: #{reconstruction_loss.2} parent=1 // pred_region
      _
    $region33: #{reconstruction_loss.2} parent=1 // pred_fallthru
      _
    // Predicated region
    $region34: #{reconstruction_loss.2} parent=1 // pred_check
      _
    $region35: #{reconstruction_loss.2} parent=1 // pred_check_branch
      %532 = sbr.rel (0) target = $region37
    $region36: #{reconstruction_loss.2} parent=1 // pred_region
      _
    $region37: #{reconstruction_loss.2} parent=1 // pred_fallthru
      _
    // Predicated region
    $region38: #{reconstruction_loss.2} parent=1 // pred_check
      _
    $region39: #{reconstruction_loss.2} parent=1 // pred_check_branch
      %534 = sbr.rel (0) target = $region41
    $region40: #{reconstruction_loss.2} parent=1 // pred_region
      _
    $region41: #{reconstruction_loss.2} parent=1 // pred_fallthru
      _

</llo_original>
